<compile_context>
chip_gen: v7x
topology: tpu7x:2x2x1
jax: 0.10.0
libtpu: 0.0.40
codegen_flags: <defaults>
</compile_context>

<pallas_src>
import jax
import jax.numpy as jnp
from jax.experimental import pallas as pl
from jax.experimental.pallas import tpu as pltpu

_VMEM_LIMIT = 32 * 1024 * 1024     # safe scoped-VMEM target on v5e/v6e/v7x
_BLOCK_BUDGET = 24 * 1024 * 1024   # block footprint budget (headroom under limit)


# ---------------------------------------------------------------------------
# Path 1: batch-blocked batched matmul.  Covers the tiny-shape case with a
# single grid step (bb == B) and amortizes per-step overhead otherwise.
# ---------------------------------------------------------------------------
def _bmm_batch_kernel(coeff_ref, x_ref, o_ref):
    # coeff_ref: (bb, T, K), x_ref: (bb, K, D), o_ref: (bb, T, D)
    o_ref[...] = jnp.einsum(
        "btk,bkd->btd",
        coeff_ref[...],
        x_ref[...],
        preferred_element_type=jnp.float32,
    ).astype(o_ref.dtype)


def _bmm_batch_blocked(coeff, x, out_dtype, bb):
    B, T, K = coeff.shape
    D = x.shape[-1]
    itemsize = jnp.dtype(out_dtype).itemsize
    cost = pl.CostEstimate(
        flops=2 * B * T * K * D,
        transcendentals=0,
        bytes_accessed=itemsize * (B * T * K + B * K * D + B * T * D),
    )
    return pl.pallas_call(
        _bmm_batch_kernel,
        out_shape=jax.ShapeDtypeStruct((B, T, D), out_dtype),
        grid=(B // bb,),
        in_specs=[
            pl.BlockSpec((bb, T, K), lambda i: (i, 0, 0)),
            pl.BlockSpec((bb, K, D), lambda i: (i, 0, 0)),
        ],
        out_specs=pl.BlockSpec((bb, T, D), lambda i: (i, 0, 0)),
        compiler_params=pltpu.CompilerParams(
            dimension_semantics=("parallel",),
            vmem_limit_bytes=_VMEM_LIMIT,
        ),
        cost_estimate=cost,
    )(coeff, x)


# ---------------------------------------------------------------------------
# Path 2: explicit (T, D, K) tiling with an f32 accumulator, for shapes where
# a full per-batch block no longer fits the VMEM budget (production sizes).
# ---------------------------------------------------------------------------
def _bmm_tiled_kernel(coeff_ref, x_ref, o_ref, acc_ref):
    @pl.when(pl.program_id(3) == 0)
    def _init():
        acc_ref[...] = jnp.zeros_like(acc_ref)

    acc_ref[...] += jnp.dot(
        coeff_ref[...], x_ref[...], preferred_element_type=jnp.float32
    )

    @pl.when(pl.program_id(3) == pl.num_programs(3) - 1)
    def _store():
        o_ref[...] = acc_ref[...].astype(o_ref.dtype)


def _pick_tile(dim, candidates):
    for c in candidates:
        if dim % c == 0:
            return c
    return dim  # full extent always satisfies the (8,128) layout rule


def _bmm_tiled(coeff, x, out_dtype):
    B, T, K = coeff.shape
    D = x.shape[-1]
    tm = _pick_tile(T, (512, 256, 128, 64, 32, 16, 8))
    tn = _pick_tile(D, (512, 256, 128))
    tk = _pick_tile(K, (1024, 512, 256, 128))
    # TODO(synk): dims with no nice divisor fall back to full-extent tiles;
    # such shapes need a padded/masked tiling scheme to stay inside v7x's
    # 32 MiB scoped VMEM.
    itemsize = jnp.dtype(out_dtype).itemsize
    cost = pl.CostEstimate(
        flops=2 * B * T * K * D,
        transcendentals=0,
        bytes_accessed=itemsize
        * (B * T * K * (D // tn) + B * K * D * (T // tm) + B * T * D),
    )
    return pl.pallas_call(
        _bmm_tiled_kernel,
        out_shape=jax.ShapeDtypeStruct((B, T, D), out_dtype),
        grid=(B, T // tm, D // tn, K // tk),
        in_specs=[
            pl.BlockSpec((pl.Squeezed(), tm, tk), lambda b, i, j, k: (b, i, k)),
            pl.BlockSpec((pl.Squeezed(), tk, tn), lambda b, i, j, k: (b, k, j)),
        ],
        out_specs=pl.BlockSpec(
            (pl.Squeezed(), tm, tn), lambda b, i, j, k: (b, i, j)
        ),
        scratch_shapes=[pltpu.VMEM((tm, tn), jnp.float32)],
        compiler_params=pltpu.CompilerParams(
            dimension_semantics=("parallel", "parallel", "parallel", "arbitrary"),
            vmem_limit_bytes=_VMEM_LIMIT,
        ),
        cost_estimate=cost,
    )(coeff, x)


# ---------------------------------------------------------------------------
# Wrapper (forward pass of MatrixReconstruction).
# ---------------------------------------------------------------------------
def matrix_reconstruction(coeff, x):
    """result = coeff.matmul(x), batched over the leading dim."""
    B, T, K = coeff.shape
    Bx, Kx, D = x.shape
    assert B == Bx and K == Kx, "shape mismatch"

    out_dtype = jnp.result_type(coeff.dtype, x.dtype)

    # Lane-dense output: when the feature dim is narrower than a vreg lane
    # row (128), pad it so the kernel emits full-width (unmasked) stores;
    # the zero padding is sliced off after the kernel.
    D_pad = D
    if D < 128:
        D_pad = 128
        x = jnp.pad(x, ((0, 0), (0, 0), (0, D_pad - D)))

    itemsize = jnp.dtype(out_dtype).itemsize
    # Per-batch VMEM footprint, double-buffered by the BlockSpec pipeline.
    per_batch_bytes = 2 * (T * K + K * D_pad + T * D_pad) * itemsize

    if per_batch_bytes <= _BLOCK_BUDGET:
        # Largest divisor of B whose blocks fit the budget.  For small
        # problems bb == B, i.e. one grid step holding the whole problem.
        bb = 1
        for cand in range(B, 0, -1):
            if B % cand == 0 and cand * per_batch_bytes <= _BLOCK_BUDGET:
                bb = cand
                break
        out = _bmm_batch_blocked(coeff, x, out_dtype, bb)
    else:
        out = _bmm_tiled(coeff, x, out_dtype)

    if D_pad != D:
        out = out[..., :D]
    return out


if __name__ == "__main__":
    # MatrixReconstruction(batch_size=2, ntopic=8, nbow=16); input feature dim = 32
    B, T, K, D = 2, 8, 16, 32

    key = jax.random.PRNGKey(0)
    k_coeff, k_x = jax.random.split(key)

    # Deterministic stand-in for nn.Parameter(torch.randn(batch, ntopic, nbow)).
    # (compute_coeff_pos() is a training-time in-place clamp, not part of forward.)
    coeff = jax.random.normal(k_coeff, (B, T, K), dtype=jnp.float32)
    x = jax.random.normal(k_x, (B, K, D), dtype=jnp.float32)

    out = jax.block_until_ready(matrix_reconstruction(coeff, x))

    ref = jnp.matmul(coeff, x)
    assert out.shape == (B, T, D)
    assert jnp.allclose(out, ref, atol=1e-5, rtol=1e-5), "mismatch vs reference"

    print("KERNEL_OK")
</pallas_src>

<mosaic_0001>
module attributes {stable_mosaic.version = 11 : i64} {
  func.func @_bmm_batch_kernel(%arg0: i32, %arg1: memref<2x8x16xf32, #tpu.memory_space<vmem>>, %arg2: memref<2x16x128xf32, #tpu.memory_space<vmem>>, %arg3: memref<2x8x128xf32, #tpu.memory_space<vmem>>) attributes {dimension_semantics = [#tpu.dimension_semantics<parallel>], iteration_bounds = array<i64: 1>, scalar_prefetch = 0 : i64, scratch_operands = 0 : i64, tpu.core_type = #tpu.core_type<tc>, window_params = [{transform_indices = @transform_0, window_bounds = array<i64: 2, 8, 16>}, {transform_indices = @transform_1, window_bounds = array<i64: 2, 16, 128>}, {transform_indices = @transform_2, window_bounds = array<i64: 2, 8, 128>}]} {
    %c0 = arith.constant 0 : index
    %c0_0 = arith.constant 0 : index
    %c0_1 = arith.constant 0 : index
    %0 = vector.load %arg1[%c0, %c0_0, %c0_1] : memref<2x8x16xf32, #tpu.memory_space<vmem>>, vector<2x8x16xf32>
    %c0_2 = arith.constant 0 : index
    %c0_3 = arith.constant 0 : index
    %c0_4 = arith.constant 0 : index
    %1 = vector.load %arg2[%c0_2, %c0_3, %c0_4] : memref<2x16x128xf32, #tpu.memory_space<vmem>>, vector<2x16x128xf32>
    "tpu.trace_start"() <{level = 10 : i32, message = "btk,bkd->btd"}> : () -> ()
    %cst = arith.constant dense<0.000000e+00> : vector<2x8x128xf32>
    %2 = tpu.matmul %0, %1, %cst {dimension_numbers = #tpu.dot_dimension_numbers<[2], [1], [1], [2], [0, 0, 0, 1, 1, 2], [0], [0]>} : vector<2x8x16xf32>, vector<2x16x128xf32>, vector<2x8x128xf32> -> vector<2x8x128xf32>
    "tpu.trace_stop"() : () -> ()
    %c0_5 = arith.constant 0 : index
    %c0_6 = arith.constant 0 : index
    %c0_7 = arith.constant 0 : index
    %3 = vector.load %arg3[%c0_5, %c0_6, %c0_7] : memref<2x8x128xf32, #tpu.memory_space<vmem>>, vector<2x8x128xf32>
    tpu.vector_store %arg3[%c0_5, %c0_6, %c0_7], %2 {strides = array<i32>} : memref<2x8x128xf32, #tpu.memory_space<vmem>>, vector<2x8x128xf32>,
    return
  }
  func.func @transform_0(%arg0: i32) -> (i32, i32, i32) {
    %c0_i32 = arith.constant 0 : i32
    %c0_i32_0 = arith.constant 0 : i32
    %c0_i32_1 = arith.constant 0 : i32
    return %arg0, %c0_i32, %c0_i32_0 : i32, i32, i32
  }
  func.func @transform_1(%arg0: i32) -> (i32, i32, i32) {
    %c0_i32 = arith.constant 0 : i32
    %c0_i32_0 = arith.constant 0 : i32
    %c0_i32_1 = arith.constant 0 : i32
    return %arg0, %c0_i32, %c0_i32_0 : i32, i32, i32
  }
  func.func @transform_2(%arg0: i32) -> (i32, i32, i32) {
    %c0_i32 = arith.constant 0 : i32
    %c0_i32_0 = arith.constant 0 : i32
    %c0_i32_1 = arith.constant 0 : i32
    return %arg0, %c0_i32, %c0_i32_0 : i32, i32, i32
  }
}

</mosaic_0001>

<llo_original>
// kernel: tpu_custom_call.1
$region0: #{tpu_custom_call.1}
  #allocation0 [shape = 'u32[]', space=smem, size = 0x4, offset = 0x4, fixed_abs, tag = 'smem constant byte address 0x4 - core index']
  #allocation1 [shape = 'u32[144,128]{1,0:T(1,128)}', space=vmem, size = 0x12000, scoped, tag = 'internal scratch']
  %s0 = inlined_call_operand.hbm [shape: f32[2,8,16], index: 0, kind: input, shape index: {}]
  %s1 = inlined_call_operand.hbm [shape: f32[2,16,128], index: 1, kind: input, shape index: {}]
  %s2 = inlined_call_operand.hbm [shape: f32[2,8,128], index: 2, kind: output, shape index: {}]
  %s3 = sld [smem:[#allocation0]]
  $region26: #{tpu_custom_call.1} parent=0
    _
  %s5 = ssub.s32 1, %s3
  %s6 = scalar_select 0, %s5, %s3
  $region1: #{tpu_custom_call.1} parent=0
    #allocation2 [shape = 'u8[8192]{0}', space=vmem, size = 0x2000, scoped, tag = 'input window, operand 0, single buffered']
    #allocation3 [shape = 's32[1]{0}', space=sflag, size = 0x4, scoped, tag = 'scoped memory for tpu_custom_call.1']
    #allocation4 [shape = 's32[1]{0}', space=sflag, size = 0x4, scoped, tag = 'scoped memory for tpu_custom_call.1']
    #allocation5 [shape = 'u8[16384]{0}', space=vmem, size = 0x4000, scoped, tag = 'input window, operand 1, single buffered']
    #allocation6 [shape = 's32[1]{0}', space=sflag, size = 0x4, scoped, tag = 'scoped memory for tpu_custom_call.1']
    #allocation7 [shape = 'u8[8192]{0}', space=vmem, size = 0x2000, scoped, tag = 'output window, operand 0, single buffered']
    %7 = vsyncpa [#allocation3], 0
    %8 = vsyncpa [#allocation6], 0
    %9 = vsyncpa [#allocation4], 0
    // Predicated region
    $region2: #{tpu_custom_call.1} parent=1 // pred_check
      _
    $region3: #{tpu_custom_call.1} parent=1 // pred_check_branch
      %11 = sbr.rel (0) target = $region5
    $region4: #{tpu_custom_call.1} parent=1 // pred_region
      %s13 = ssub.s32 256, 256
      %14 = vsyncadd [#allocation3], %s13
      %s15 = sshll.u32 [#allocation2], 4
      %s16 = int_to_ptr.vmem [resolvable:$true] %s15
      %21 = dma.hbm_to_vmem [thread:$0]  %s0, 256, %s16, [#allocation3], 128, 128, 8
    $region5: #{tpu_custom_call.1} parent=1 // pred_fallthru
      _
    // Predicated region
    $region6: #{tpu_custom_call.1} parent=1 // pred_check
      _
    $region7: #{tpu_custom_call.1} parent=1 // pred_check_branch
      %23 = sbr.rel (0) target = $region9
    $region8: #{tpu_custom_call.1} parent=1 // pred_region
      %s25 = ssub.s32 512, 512
      %26 = vsyncadd [#allocation6], %s25
      %s27 = sshll.u32 [#allocation5], 4
      %s28 = int_to_ptr.vmem [resolvable:$true] %s27
      %33 = dma.hbm_to_vmem [thread:$0]  %s1, 512, %s28, [#allocation6], 128, 128, 8
    $region9: #{tpu_custom_call.1} parent=1 // pred_fallthru
      _
    // Predicated region
    $region10: #{tpu_custom_call.1} parent=1 // pred_check
      _
    $region11: #{tpu_custom_call.1} parent=1 // pred_check_branch
      %35 = sbr.rel (0) target = $region13
    $region12: #{tpu_custom_call.1} parent=1 // pred_region
      %36 = dma.done [#allocation3], 256
    $region13: #{tpu_custom_call.1} parent=1 // pred_fallthru
      _
    // Predicated region
    $region14: #{tpu_custom_call.1} parent=1 // pred_check
      _
    $region15: #{tpu_custom_call.1} parent=1 // pred_check_branch
      %38 = sbr.rel (0) target = $region17
    $region16: #{tpu_custom_call.1} parent=1 // pred_region
      %39 = dma.done [#allocation6], 512
    $region17: #{tpu_custom_call.1} parent=1 // pred_fallthru
      _
    %v40 = vld [vmem:[#allocation2] sm:$0xff]
    %v41 = vld [vmem:[#allocation2 + $0x8] sm:$0xff]
    %v42 = vld [vmem:[#allocation5] sm:$0xff]
    %v43 = vld [vmem:[#allocation5 + $0x8] sm:$0xff]
    %v44 = vld [vmem:[#allocation5 + $0x10] sm:$0xff]
    %v45 = vld [vmem:[#allocation5 + $0x18] sm:$0xff]
    %vm46 = vcmask 130048
    %v48 = vsel %vm46, %v40, 0
    %50 = vmatprep.subr.mxu0 0.0
    %51 = vmatpush1.msra.mxu0 %v42
    %52 = vmatprep.subr.mxu0 0.0
    %53 = vmatpush1.msra.mxu0 %v43
    %54 = vmatprep.subr.mxu0 0.0
    %55 = vmatpush1.msra.mxu0 0.0
    %56 = vmatprep.subr.mxu0 0.0
    %57 = vmatpush1.msra.mxu0 0.0
    %58 = vmatprep.subr.mxu0 0.0
    %59 = vmatpush1.msra.mxu0 0.0
    %60 = vmatprep.subr.mxu0 0.0
    %61 = vmatpush1.msra.mxu0 0.0
    %62 = vmatprep.subr.mxu0 0.0
    %63 = vmatpush1.msra.mxu0 0.0
    %64 = vmatprep.subr.mxu0 0.0
    %65 = vmatpush1.msra.mxu0 0.0
    %66 = vmatprep.subr.mxu0 0.0
    %67 = vmatpush1.msra.mxu0 0.0
    %68 = vmatprep.subr.mxu0 0.0
    %69 = vmatpush1.msra.mxu0 0.0
    %70 = vmatprep.subr.mxu0 0.0
    %71 = vmatpush1.msra.mxu0 0.0
    %72 = vmatprep.subr.mxu0 0.0
    %73 = vmatpush1.msra.mxu0 0.0
    %74 = vmatprep.subr.mxu0 0.0
    %75 = vmatpush1.msra.mxu0 0.0
    %76 = vmatprep.subr.mxu0 0.0
    %77 = vmatpush1.msra.mxu0 0.0
    %78 = vmatprep.subr.mxu0 0.0
    %79 = vmatpush1.msra.mxu0 0.0
    %80 = vmatprep.subr.mxu0 0.0
    %81 = vmatpush1.msra.mxu0 0.0
    %82 = vmatprep.subr.mxu0 0.0
    %83 = vmatpush1.msra.mxu0 0.0
    %84 = vmatprep.subr.mxu0 0.0
    %85 = vmatpush1.msra.mxu0 0.0
    %86 = vmatprep.subr.mxu0 0.0
    %87 = vmatpush1.msra.mxu0 0.0
    %88 = vmatprep.subr.mxu0 0.0
    %89 = vmatpush1.msra.mxu0 0.0
    %90 = vmatprep.subr.mxu0 0.0
    %91 = vmatpush1.msra.mxu0 0.0
    %92 = vmatprep.subr.mxu0 0.0
    %93 = vmatpush1.msra.mxu0 0.0
    %94 = vmatprep.subr.mxu0 0.0
    %95 = vmatpush1.msra.mxu0 0.0
    %96 = vmatprep.subr.mxu0 0.0
    %97 = vmatpush1.msra.mxu0 0.0
    %98 = vmatprep.subr.mxu0 0.0
    %99 = vmatpush1.msra.mxu0 0.0
    %100 = vmatprep.subr.mxu0 0.0
    %101 = vmatpush1.msra.mxu0 0.0
    %102 = vmatprep.subr.mxu0 0.0
    %103 = vmatpush1.msra.mxu0 0.0
    %104 = vmatprep.subr.mxu0 0.0
    %105 = vmatpush1.msra.mxu0 0.0
    %106 = vmatprep.subr.mxu0 0.0
    %107 = vmatpush1.msra.mxu0 0.0
    %108 = vmatprep.subr.mxu0 0.0
    %109 = vmatpush1.msra.mxu0 0.0
    %110 = vmatprep.subr.mxu0 0.0
    %111 = vmatpush1.msra.mxu0 0.0
    %112 = vmatprep.subr.mxu0 0.0
    %113 = vmatpush1.msra.mxu0 0.0
    %114 = vmatprep.mubr.f32.mxu0 0.0
    %115 = vmatmul.mubr.f32.gmra.mrb[0].mxu0 %v48
    %v116 = vpop.f32.mrb[0].mxu0
    %v117 = vadd.f32 0.0, %v116
    %v118 = vpop.f32.mrb[0].mxu0
    %119 = vdwg.mxu0
    %v121 = vsel %vm46, %v41, 0
    %123 = vmatprep.subr.mxu0 0.0
    %124 = vmatpush1.msra.mxu0 %v44
    %125 = vmatprep.subr.mxu0 0.0
    %126 = vmatpush1.msra.mxu0 %v45
    %127 = vmatprep.subr.mxu0 0.0
    %128 = vmatpush1.msra.mxu0 0.0
    %129 = vmatprep.subr.mxu0 0.0
    %130 = vmatpush1.msra.mxu0 0.0
    %131 = vmatprep.subr.mxu0 0.0
    %132 = vmatpush1.msra.mxu0 0.0
    %133 = vmatprep.subr.mxu0 0.0
    %134 = vmatpush1.msra.mxu0 0.0
    %135 = vmatprep.subr.mxu0 0.0
    %136 = vmatpush1.msra.mxu0 0.0
    %137 = vmatprep.subr.mxu0 0.0
    %138 = vmatpush1.msra.mxu0 0.0
    %139 = vmatprep.subr.mxu0 0.0
    %140 = vmatpush1.msra.mxu0 0.0
    %141 = vmatprep.subr.mxu0 0.0
    %142 = vmatpush1.msra.mxu0 0.0
    %143 = vmatprep.subr.mxu0 0.0
    %144 = vmatpush1.msra.mxu0 0.0
    %145 = vmatprep.subr.mxu0 0.0
    %146 = vmatpush1.msra.mxu0 0.0
    %147 = vmatprep.subr.mxu0 0.0
    %148 = vmatpush1.msra.mxu0 0.0
    %149 = vmatprep.subr.mxu0 0.0
    %150 = vmatpush1.msra.mxu0 0.0
    %151 = vmatprep.subr.mxu0 0.0
    %152 = vmatpush1.msra.mxu0 0.0
    %153 = vmatprep.subr.mxu0 0.0
    %154 = vmatpush1.msra.mxu0 0.0
    %155 = vmatprep.subr.mxu0 0.0
    %156 = vmatpush1.msra.mxu0 0.0
    %157 = vmatprep.subr.mxu0 0.0
    %158 = vmatpush1.msra.mxu0 0.0
    %159 = vmatprep.subr.mxu0 0.0
    %160 = vmatpush1.msra.mxu0 0.0
    %161 = vmatprep.subr.mxu0 0.0
    %162 = vmatpush1.msra.mxu0 0.0
    %163 = vmatprep.subr.mxu0 0.0
    %164 = vmatpush1.msra.mxu0 0.0
    %165 = vmatprep.subr.mxu0 0.0
    %166 = vmatpush1.msra.mxu0 0.0
    %167 = vmatprep.subr.mxu0 0.0
    %168 = vmatpush1.msra.mxu0 0.0
    %169 = vmatprep.subr.mxu0 0.0
    %170 = vmatpush1.msra.mxu0 0.0
    %171 = vmatprep.subr.mxu0 0.0
    %172 = vmatpush1.msra.mxu0 0.0
    %173 = vmatprep.subr.mxu0 0.0
    %174 = vmatpush1.msra.mxu0 0.0
    %175 = vmatprep.subr.mxu0 0.0
    %176 = vmatpush1.msra.mxu0 0.0
    %177 = vmatprep.subr.mxu0 0.0
    %178 = vmatpush1.msra.mxu0 0.0
    %179 = vmatprep.subr.mxu0 0.0
    %180 = vmatpush1.msra.mxu0 0.0
    %181 = vmatprep.subr.mxu0 0.0
    %182 = vmatpush1.msra.mxu0 0.0
    %183 = vmatprep.subr.mxu0 0.0
    %184 = vmatpush1.msra.mxu0 0.0
    %185 = vmatprep.subr.mxu0 0.0
    %186 = vmatpush1.msra.mxu0 0.0
    %187 = vmatprep.mubr.f32.mxu0 0.0
    %188 = vmatmul.mubr.f32.gmra.mrb[0].mxu0 %v121
    %v189 = vpop.f32.mrb[0].mxu0
    %v190 = vadd.f32 0.0, %v189
    %v191 = vpop.f32.mrb[0].mxu0
    %192 = vdwg.mxu0
    %193 = vst [vmem:[#allocation7] sm:$0xff] %v117
    %194 = vst [vmem:[#allocation7 + $0x8] sm:$0xff] %v190
    // Predicated region
    $region18: #{tpu_custom_call.1} parent=1 // pred_check
      _
    $region19: #{tpu_custom_call.1} parent=1 // pred_check_branch
      %196 = sbr.rel (0) target = $region21
    $region20: #{tpu_custom_call.1} parent=1 // pred_region
      %s198 = ssub.s32 256, 256
      %199 = vsyncadd [#allocation4], %s198
      %s200 = sshll.u32 [#allocation7], 4
      %s201 = int_to_ptr.vmem [resolvable:$true] %s200
      %206 = dma.vmem_to_hbm [thread:$0]  %s201, 256, %s2, [#allocation4], 128, 128, 8
    $region21: #{tpu_custom_call.1} parent=1 // pred_fallthru
      _
    // Predicated region
    $region22: #{tpu_custom_call.1} parent=1 // pred_check
      _
    $region23: #{tpu_custom_call.1} parent=1 // pred_check_branch
      %208 = sbr.rel (0) target = $region25
    $region24: #{tpu_custom_call.1} parent=1 // pred_region
      %209 = dma.done [#allocation4], 256
    $region25: #{tpu_custom_call.1} parent=1 // pred_fallthru
      _
    %210 = vsyncpa [#allocation3], 1
    %211 = vsyncpa [#allocation6], 1
    %212 = vsyncpa [#allocation4], 1

</llo_original>
